<compile_context>
chip_gen: v7x
topology: tpu7x:2x2x1
jax: 0.10.0
libtpu: 0.0.40
codegen_flags: <defaults>
</compile_context>

<pallas_src>
import jax
import jax.numpy as jnp
from jax.experimental import pallas as pl
from jax.experimental.pallas import tpu as pltpu

_MIB = 1024 * 1024

# Below this cin*cout product (and off v7x) the unrolled VPU FMA path is used;
# wider channel counts (or v7x) feed the otherwise-idle MXU instead.
_VPU_MAX_CIN_X_COUT = 64


def _round_up(a, m):
    return ((a + m - 1) // m) * m


def _tpu_vmem_capacity_bytes():
    """Physical per-core VMEM; conservative 128 MiB default if the query fails."""
    try:
        return int(pltpu.get_tpu_info().vmem_capacity_bytes)
    except Exception:  # off-TPU tracing / older jax: assume v5e/v6e-sized VMEM
        return 128 * _MIB


def _conv1x1_vpu_kernel(x_ref, w_ref, b_ref, o_ref):
    """VPU path: y[b, o, p] = sum_i w[o, i] * x[b, i, p] + b[o].

    x_ref: (bn, Cin, ts)  VMEM  - pixels on lanes, channels on sublanes
    w_ref: (Cout, Cin)    SMEM  - read as scalars (free VPU splats)
    b_ref: (Cout,)        SMEM
    o_ref: (bn, Cout, ts) VMEM  - lane-dense output tile
    """
    _, cin, _ = x_ref.shape
    cout = o_ref.shape[1]
    for o in range(cout):
        # Bias folded into the first multiply-add; channel slices are cast
        # individually so bf16 inputs never materialize a full f32 x tile.
        acc = w_ref[o, 0] * x_ref[:, 0, :].astype(jnp.float32) + b_ref[o]
        for i in range(1, cin):
            acc = acc + w_ref[o, i] * x_ref[:, i, :].astype(jnp.float32)
        o_ref[:, o, :] = acc.astype(o_ref.dtype)


def _conv1x1_mxu_kernel(x_ref, w_ref, b_ref, o_ref):
    """MXU path: batched (Cout,Cin)@(Cin,ts) on native-dtype operands.

    x_ref: (bn, Cin, ts)  VMEM
    w_ref: (Cout, Cin)    VMEM  (cast to x dtype in the wrapper)
    b_ref: (Cout, 1)      VMEM  (f32)
    o_ref: (bn, Cout, ts) VMEM
    """
    bn = x_ref.shape[0]
    w = w_ref[...]
    wb = jnp.broadcast_to(w[None], (bn,) + w.shape)  # tiny, hoisted once/step
    precision = (jax.lax.Precision.HIGHEST
                 if x_ref.dtype == jnp.float32 else jax.lax.Precision.DEFAULT)
    y = jax.lax.dot_general(
        wb, x_ref[...],
        dimension_numbers=(((2,), (1,)), ((0,), (0,))),  # 'boi,bip->bop'
        preferred_element_type=jnp.float32,
        precision=precision)
    o_ref[...] = (y + b_ref[...][None, :, :]).astype(o_ref.dtype)


def _choose_tiles(n, p, padded_ch_bytes, step_budget, max_lane_tile):
    """Pick (batch tile, lane tile) for a bandwidth-bound 1x1 conv."""
    ts = p if p <= max_lane_tile else max_lane_tile
    # Shrink the lane tile (multiple of 128) if one batch row overshoots the
    # per-step traffic budget (very wide channel counts).
    if ts > 128 and padded_ch_bytes * ts > step_budget:
        ts = max(128, (step_budget // padded_ch_bytes) // 128 * 128)
    max_pixels = max(ts, step_budget // max(1, padded_ch_bytes))
    bn = max(1, min(n, max_pixels // ts))
    return bn, ts


def feature_map_forward(x_nchw, weight_oi, bias_o):
    """1x1 Conv2d forward (FeatureMap).

    Args:
      x_nchw:    (N, Cin, H, W) input, PyTorch NCHW layout.
      weight_oi: (Cout, Cin) weight (Conv2d weight squeezed over the 1x1 dims).
      bias_o:    (Cout,) bias.
    Returns:
      (N, Cout, H, W) output in x's dtype.
    """
    n, cin, h, w = x_nchw.shape
    cout = weight_oi.shape[0]
    p = h * w
    itemsize = jnp.dtype(x_nchw.dtype).itemsize

    # Free (transpose-less) views: collapse spatial dims, keep NCHW order.
    x3 = x_nchw.reshape(n, cin, p)

    # Generation-aware knobs; v7x is identified by its 64 MiB per-core VMEM.
    vmem_cap = _tpu_vmem_capacity_bytes()
    is_v7x = vmem_cap <= 96 * _MIB
    step_budget = (8 if is_v7x else 4) * _MIB
    max_lane_tile = 4096 if is_v7x else 2048

    # Path selection: tiny channel counts -> VPU FMAs with SMEM scalar
    # weights; wide channel counts or v7x -> the otherwise-idle MXU.
    use_mxu = is_v7x or (cin * cout >= _VPU_MAX_CIN_X_COUT)

    # Channels round up to the dtype sublane tile (8 f32 / 16 bf16 / 32 int8)
    # in VMEM; account for that padding when sizing tiles and the VMEM limit.
    sublane = (8 * 4) // itemsize
    padded_ch_bytes = (_round_up(cin, sublane) + _round_up(cout, sublane)) * itemsize

    bn, ts = _choose_tiles(n, p, padded_ch_bytes, step_budget, max_lane_tile)
    grid = (pl.cdiv(n, bn), pl.cdiv(p, ts))

    # Padded per-step footprint (x tile + out tile); size the scoped limit
    # with double-buffering headroom, capped per generation.
    tile_bytes = bn * ts * padded_ch_bytes
    vmem_cap_limit = min(48 * _MIB, max(16 * _MIB, vmem_cap // 2))
    vmem_limit = int(min(vmem_cap_limit, max(16 * _MIB, 4 * tile_bytes)))

    if use_mxu:
        kernel = _conv1x1_mxu_kernel
        w_arg = weight_oi.astype(x_nchw.dtype)               # native-dtype MXU
        b_arg = bias_o.astype(jnp.float32).reshape(cout, 1)
        w_spec = pl.BlockSpec((cout, cin), lambda bi, si: (0, 0))
        b_spec = pl.BlockSpec((cout, 1), lambda bi, si: (0, 0))
    else:
        kernel = _conv1x1_vpu_kernel
        w_arg = weight_oi.astype(jnp.float32)                 # scalars in SMEM
        b_arg = bias_o.astype(jnp.float32)
        w_spec = pl.BlockSpec(memory_space=pltpu.MemorySpace.SMEM)
        b_spec = pl.BlockSpec(memory_space=pltpu.MemorySpace.SMEM)

    bytes_accessed = (n * p * (cin + cout) * itemsize
                      + w_arg.size * jnp.dtype(w_arg.dtype).itemsize
                      + b_arg.size * jnp.dtype(b_arg.dtype).itemsize)

    out3 = pl.pallas_call(
        kernel,
        out_shape=jax.ShapeDtypeStruct((n, cout, p), x_nchw.dtype),
        grid_spec=pltpu.PrefetchScalarGridSpec(
            num_scalar_prefetch=0,
            grid=grid,
            in_specs=[
                pl.BlockSpec((bn, cin, ts), lambda bi, si: (bi, 0, si)),   # x
                w_spec,                                                    # W
                b_spec,                                                    # b
            ],
            out_specs=pl.BlockSpec((bn, cout, ts), lambda bi, si: (bi, 0, si)),
        ),
        compiler_params=pltpu.CompilerParams(
            # Both grid axes are independent; lets both TensorCores split the
            # grid on v7x.
            dimension_semantics=("parallel", "parallel"),
            vmem_limit_bytes=vmem_limit,
        ),
        cost_estimate=pl.CostEstimate(
            flops=2 * n * p * cin * cout,
            transcendentals=0,
            bytes_accessed=bytes_accessed,
        ),
    )(x3, w_arg, b_arg)

    # Free reshape back to NCHW spatial dims.
    return out3.reshape(n, cout, h, w)


def _reference(x_nchw, weight_oi, bias_o):
    # Pure-JAX reference of the 1x1 conv for validation.
    y = jnp.einsum("nihw,oi->nohw", x_nchw.astype(jnp.float32),
                   weight_oi.astype(jnp.float32))
    return (y + bias_o.astype(jnp.float32)[None, :, None, None]).astype(x_nchw.dtype)


if __name__ == "__main__":
    # Shapes consistent with the module: FeatureMap(input_n=4, output_n=8).
    batch, cin, cout, spatial = 2, 4, 8, 16

    key = jax.random.PRNGKey(0)
    kx, kw, kb = jax.random.split(key, 3)

    x = jax.random.normal(kx, (batch, cin, spatial, spatial), dtype=jnp.float32)
    # Conv2d weight (Cout, Cin, 1, 1) squeezed to (Cout, Cin); uniform init.
    bound = 1.0 / jnp.sqrt(float(cin))
    weight = jax.random.uniform(kw, (cout, cin), minval=-bound, maxval=bound,
                                dtype=jnp.float32)
    bias = jax.random.uniform(kb, (cout,), minval=-bound, maxval=bound,
                              dtype=jnp.float32)

    fwd = jax.jit(feature_map_forward)
    out = fwd(x, weight, bias)
    jax.block_until_ready(out)

    ref = _reference(x, weight, bias)
    assert out.shape == (batch, cout, spatial, spatial), out.shape
    assert jnp.allclose(out, ref, atol=1e-4, rtol=1e-4), "mismatch vs reference"

    print("KERNEL_OK")
</pallas_src>

<mosaic_0001>
module attributes {stable_mosaic.version = 11 : i64} {
  func.func @_conv1x1_vpu_kernel(%arg0: i32, %arg1: i32, %arg2: memref<2x4x256xf32, #tpu.memory_space<vmem>>, %arg3: memref<8x4xf32, #tpu.memory_space<smem>>, %arg4: memref<8xf32, #tpu.memory_space<smem>>, %arg5: memref<2x8x256xf32, #tpu.memory_space<vmem>>) attributes {dimension_semantics = [#tpu.dimension_semantics<parallel>, #tpu.dimension_semantics<parallel>], iteration_bounds = array<i64: 1, 1>, scalar_prefetch = 0 : i64, scratch_operands = 0 : i64, tpu.core_type = #tpu.core_type<tc>, window_params = [{transform_indices = @transform_0, window_bounds = array<i64: 2, 4, 256>}, {transform_indices = @transform_1, window_bounds = array<i64: 8, 4>}, {transform_indices = @transform_2, window_bounds = array<i64: 8>}, {transform_indices = @transform_3, window_bounds = array<i64: 2, 8, 256>}]} {
    %c0 = arith.constant 0 : index
    %c0_0 = arith.constant 0 : index
    %0 = memref.load %arg3[%c0, %c0_0] : memref<8x4xf32, #tpu.memory_space<smem>>
    %c0_1 = arith.constant 0 : index
    %c0_2 = arith.constant 0 : index
    %c0_3 = arith.constant 0 : index
    %1 = vector.load %arg2[%c0_1, %c0_2, %c0_3] : memref<2x4x256xf32, #tpu.memory_space<vmem>>, vector<2x1x256xf32>
    %2 = vector.shape_cast %1 : vector<2x1x256xf32> to vector<2x256xf32>
    %3 = vector.broadcast %0 : f32 to vector<2x256xf32>
    %4 = arith.mulf %3, %2 : vector<2x256xf32>
    %c0_4 = arith.constant 0 : index
    %5 = memref.load %arg4[%c0_4] : memref<8xf32, #tpu.memory_space<smem>>
    %6 = vector.broadcast %5 : f32 to vector<2x256xf32>
    %7 = arith.addf %4, %6 : vector<2x256xf32>
    %c0_5 = arith.constant 0 : index
    %c1 = arith.constant 1 : index
    %8 = memref.load %arg3[%c0_5, %c1] : memref<8x4xf32, #tpu.memory_space<smem>>
    %c0_6 = arith.constant 0 : index
    %c1_7 = arith.constant 1 : index
    %c0_8 = arith.constant 0 : index
    %9 = vector.load %arg2[%c0_6, %c1_7, %c0_8] : memref<2x4x256xf32, #tpu.memory_space<vmem>>, vector<2x1x256xf32>
    %10 = vector.shape_cast %9 : vector<2x1x256xf32> to vector<2x256xf32>
    %11 = vector.broadcast %8 : f32 to vector<2x256xf32>
    %12 = arith.mulf %11, %10 : vector<2x256xf32>
    %13 = arith.addf %7, %12 : vector<2x256xf32>
    %c0_9 = arith.constant 0 : index
    %c2 = arith.constant 2 : index
    %14 = memref.load %arg3[%c0_9, %c2] : memref<8x4xf32, #tpu.memory_space<smem>>
    %c0_10 = arith.constant 0 : index
    %c2_11 = arith.constant 2 : index
    %c0_12 = arith.constant 0 : index
    %15 = vector.load %arg2[%c0_10, %c2_11, %c0_12] : memref<2x4x256xf32, #tpu.memory_space<vmem>>, vector<2x1x256xf32>
    %16 = vector.shape_cast %15 : vector<2x1x256xf32> to vector<2x256xf32>
    %17 = vector.broadcast %14 : f32 to vector<2x256xf32>
    %18 = arith.mulf %17, %16 : vector<2x256xf32>
    %19 = arith.addf %13, %18 : vector<2x256xf32>
    %c0_13 = arith.constant 0 : index
    %c3 = arith.constant 3 : index
    %20 = memref.load %arg3[%c0_13, %c3] : memref<8x4xf32, #tpu.memory_space<smem>>
    %c0_14 = arith.constant 0 : index
    %c3_15 = arith.constant 3 : index
    %c0_16 = arith.constant 0 : index
    %21 = vector.load %arg2[%c0_14, %c3_15, %c0_16] : memref<2x4x256xf32, #tpu.memory_space<vmem>>, vector<2x1x256xf32>
    %22 = vector.shape_cast %21 : vector<2x1x256xf32> to vector<2x256xf32>
    %23 = vector.broadcast %20 : f32 to vector<2x256xf32>
    %24 = arith.mulf %23, %22 : vector<2x256xf32>
    %25 = arith.addf %19, %24 : vector<2x256xf32>
    %c0_17 = arith.constant 0 : index
    %c0_18 = arith.constant 0 : index
    %c0_19 = arith.constant 0 : index
    %26 = vector.load %arg5[%c0_17, %c0_18, %c0_19] : memref<2x8x256xf32, #tpu.memory_space<vmem>>, vector<2x1x256xf32>
    %27 = vector.shape_cast %26 : vector<2x1x256xf32> to vector<2x256xf32>
    %28 = vector.shape_cast %25 : vector<2x256xf32> to vector<2x1x256xf32>
    tpu.vector_store %arg5[%c0_17, %c0_18, %c0_19], %28 {strides = array<i32>} : memref<2x8x256xf32, #tpu.memory_space<vmem>>, vector<2x1x256xf32>,
    %c1_20 = arith.constant 1 : index
    %c0_21 = arith.constant 0 : index
    %29 = memref.load %arg3[%c1_20, %c0_21] : memref<8x4xf32, #tpu.memory_space<smem>>
    %c0_22 = arith.constant 0 : index
    %c0_23 = arith.constant 0 : index
    %c0_24 = arith.constant 0 : index
    %30 = vector.load %arg2[%c0_22, %c0_23, %c0_24] : memref<2x4x256xf32, #tpu.memory_space<vmem>>, vector<2x1x256xf32>
    %31 = vector.shape_cast %30 : vector<2x1x256xf32> to vector<2x256xf32>
    %32 = vector.broadcast %29 : f32 to vector<2x256xf32>
    %33 = arith.mulf %32, %31 : vector<2x256xf32>
    %c1_25 = arith.constant 1 : index
    %34 = memref.load %arg4[%c1_25] : memref<8xf32, #tpu.memory_space<smem>>
    %35 = vector.broadcast %34 : f32 to vector<2x256xf32>
    %36 = arith.addf %33, %35 : vector<2x256xf32>
    %c1_26 = arith.constant 1 : index
    %c1_27 = arith.constant 1 : index
    %37 = memref.load %arg3[%c1_26, %c1_27] : memref<8x4xf32, #tpu.memory_space<smem>>
    %c0_28 = arith.constant 0 : index
    %c1_29 = arith.constant 1 : index
    %c0_30 = arith.constant 0 : index
    %38 = vector.load %arg2[%c0_28, %c1_29, %c0_30] : memref<2x4x256xf32, #tpu.memory_space<vmem>>, vector<2x1x256xf32>
    %39 = vector.shape_cast %38 : vector<2x1x256xf32> to vector<2x256xf32>
    %40 = vector.broadcast %37 : f32 to vector<2x256xf32>
    %41 = arith.mulf %40, %39 : vector<2x256xf32>
    %42 = arith.addf %36, %41 : vector<2x256xf32>
    %c1_31 = arith.constant 1 : index
    %c2_32 = arith.constant 2 : index
    %43 = memref.load %arg3[%c1_31, %c2_32] : memref<8x4xf32, #tpu.memory_space<smem>>
    %c0_33 = arith.constant 0 : index
    %c2_34 = arith.constant 2 : index
    %c0_35 = arith.constant 0 : index
    %44 = vector.load %arg2[%c0_33, %c2_34, %c0_35] : memref<2x4x256xf32, #tpu.memory_space<vmem>>, vector<2x1x256xf32>
    %45 = vector.shape_cast %44 : vector<2x1x256xf32> to vector<2x256xf32>
    %46 = vector.broadcast %43 : f32 to vector<2x256xf32>
    %47 = arith.mulf %46, %45 : vector<2x256xf32>
    %48 = arith.addf %42, %47 : vector<2x256xf32>
    %c1_36 = arith.constant 1 : index
    %c3_37 = arith.constant 3 : index
    %49 = memref.load %arg3[%c1_36, %c3_37] : memref<8x4xf32, #tpu.memory_space<smem>>
    %c0_38 = arith.constant 0 : index
    %c3_39 = arith.constant 3 : index
    %c0_40 = arith.constant 0 : index
    %50 = vector.load %arg2[%c0_38, %c3_39, %c0_40] : memref<2x4x256xf32, #tpu.memory_space<vmem>>, vector<2x1x256xf32>
    %51 = vector.shape_cast %50 : vector<2x1x256xf32> to vector<2x256xf32>
    %52 = vector.broadcast %49 : f32 to vector<2x256xf32>
    %53 = arith.mulf %52, %51 : vector<2x256xf32>
    %54 = arith.addf %48, %53 : vector<2x256xf32>
    %c0_41 = arith.constant 0 : index
    %c1_42 = arith.constant 1 : index
    %c0_43 = arith.constant 0 : index
    %55 = vector.load %arg5[%c0_41, %c1_42, %c0_43] : memref<2x8x256xf32, #tpu.memory_space<vmem>>, vector<2x1x256xf32>
    %56 = vector.shape_cast %55 : vector<2x1x256xf32> to vector<2x256xf32>
    %57 = vector.shape_cast %54 : vector<2x256xf32> to vector<2x1x256xf32>
    tpu.vector_store %arg5[%c0_41, %c1_42, %c0_43], %57 {strides = array<i32>} : memref<2x8x256xf32, #tpu.memory_space<vmem>>, vector<2x1x256xf32>,
    %c2_44 = arith.constant 2 : index
    %c0_45 = arith.constant 0 : index
    %58 = memref.load %arg3[%c2_44, %c0_45] : memref<8x4xf32, #tpu.memory_space<smem>>
    %c0_46 = arith.constant 0 : index
    %c0_47 = arith.constant 0 : index
    %c0_48 = arith.constant 0 : index
    %59 = vector.load %arg2[%c0_46, %c0_47, %c0_48] : memref<2x4x256xf32, #tpu.memory_space<vmem>>, vector<2x1x256xf32>
    %60 = vector.shape_cast %59 : vector<2x1x256xf32> to vector<2x256xf32>
    %61 = vector.broadcast %58 : f32 to vector<2x256xf32>
    %62 = arith.mulf %61, %60 : vector<2x256xf32>
    %c2_49 = arith.constant 2 : index
    %63 = memref.load %arg4[%c2_49] : memref<8xf32, #tpu.memory_space<smem>>
    %64 = vector.broadcast %63 : f32 to vector<2x256xf32>
    %65 = arith.addf %62, %64 : vector<2x256xf32>
    %c2_50 = arith.constant 2 : index
    %c1_51 = arith.constant 1 : index
    %66 = memref.load %arg3[%c2_50, %c1_51] : memref<8x4xf32, #tpu.memory_space<smem>>
    %c0_52 = arith.constant 0 : index
    %c1_53 = arith.constant 1 : index
    %c0_54 = arith.constant 0 : index
    %67 = vector.load %arg2[%c0_52, %c1_53, %c0_54] : memref<2x4x256xf32, #tpu.memory_space<vmem>>, vector<2x1x256xf32>
    %68 = vector.shape_cast %67 : vector<2x1x256xf32> to vector<2x256xf32>
    %69 = vector.broadcast %66 : f32 to vector<2x256xf32>
    %70 = arith.mulf %69, %68 : vector<2x256xf32>
    %71 = arith.addf %65, %70 : vector<2x256xf32>
    %c2_55 = arith.constant 2 : index
    %c2_56 = arith.constant 2 : index
    %72 = memref.load %arg3[%c2_55, %c2_56] : memref<8x4xf32, #tpu.memory_space<smem>>
    %c0_57 = arith.constant 0 : index
    %c2_58 = arith.constant 2 : index
    %c0_59 = arith.constant 0 : index
    %73 = vector.load %arg2[%c0_57, %c2_58, %c0_59] : memref<2x4x256xf32, #tpu.memory_space<vmem>>, vector<2x1x256xf32>
    %74 = vector.shape_cast %73 : vector<2x1x256xf32> to vector<2x256xf32>
    %75 = vector.broadcast %72 : f32 to vector<2x256xf32>
    %76 = arith.mulf %75, %74 : vector<2x256xf32>
    %77 = arith.addf %71, %76 : vector<2x256xf32>
    %c2_60 = arith.constant 2 : index
    %c3_61 = arith.constant 3 : index
    %78 = memref.load %arg3[%c2_60, %c3_61] : memref<8x4xf32, #tpu.memory_space<smem>>
    %c0_62 = arith.constant 0 : index
    %c3_63 = arith.constant 3 : index
    %c0_64 = arith.constant 0 : index
    %79 = vector.load %arg2[%c0_62, %c3_63, %c0_64] : memref<2x4x256xf32, #tpu.memory_space<vmem>>, vector<2x1x256xf32>
    %80 = vector.shape_cast %79 : vector<2x1x256xf32> to vector<2x256xf32>
    %81 = vector.broadcast %78 : f32 to vector<2x256xf32>
    %82 = arith.mulf %81, %80 : vector<2x256xf32>
    %83 = arith.addf %77, %82 : vector<2x256xf32>
    %c0_65 = arith.constant 0 : index
    %c2_66 = arith.constant 2 : index
    %c0_67 = arith.constant 0 : index
    %84 = vector.load %arg5[%c0_65, %c2_66, %c0_67] : memref<2x8x256xf32, #tpu.memory_space<vmem>>, vector<2x1x256xf32>
    %85 = vector.shape_cast %84 : vector<2x1x256xf32> to vector<2x256xf32>
    %86 = vector.shape_cast %83 : vector<2x256xf32> to vector<2x1x256xf32>
    tpu.vector_store %arg5[%c0_65, %c2_66, %c0_67], %86 {strides = array<i32>} : memref<2x8x256xf32, #tpu.memory_space<vmem>>, vector<2x1x256xf32>,
    %c3_68 = arith.constant 3 : index
    %c0_69 = arith.constant 0 : index
    %87 = memref.load %arg3[%c3_68, %c0_69] : memref<8x4xf32, #tpu.memory_space<smem>>
    %c0_70 = arith.constant 0 : index
    %c0_71 = arith.constant 0 : index
    %c0_72 = arith.constant 0 : index
    %88 = vector.load %arg2[%c0_70, %c0_71, %c0_72] : memref<2x4x256xf32, #tpu.memory_space<vmem>>, vector<2x1x256xf32>
    %89 = vector.shape_cast %88 : vector<2x1x256xf32> to vector<2x256xf32>
    %90 = vector.broadcast %87 : f32 to vector<2x256xf32>
    %91 = arith.mulf %90, %89 : vector<2x256xf32>
    %c3_73 = arith.constant 3 : index
    %92 = memref.load %arg4[%c3_73] : memref<8xf32, #tpu.memory_space<smem>>
    %93 = vector.broadcast %92 : f32 to vector<2x256xf32>
    %94 = arith.addf %91, %93 : vector<2x256xf32>
    %c3_74 = arith.constant 3 : index
    %c1_75 = arith.constant 1 : index
    %95 = memref.load %arg3[%c3_74, %c1_75] : memref<8x4xf32, #tpu.memory_space<smem>>
    %c0_76 = arith.constant 0 : index
    %c1_77 = arith.constant 1 : index
    %c0_78 = arith.constant 0 : index
    %96 = vector.load %arg2[%c0_76, %c1_77, %c0_78] : memref<2x4x256xf32, #tpu.memory_space<vmem>>, vector<2x1x256xf32>
    %97 = vector.shape_cast %96 : vector<2x1x256xf32> to vector<2x256xf32>
    %98 = vector.broadcast %95 : f32 to vector<2x256xf32>
    %99 = arith.mulf %98, %97 : vector<2x256xf32>
    %100 = arith.addf %94, %99 : vector<2x256xf32>
    %c3_79 = arith.constant 3 : index
    %c2_80 = arith.constant 2 : index
    %101 = memref.load %arg3[%c3_79, %c2_80] : memref<8x4xf32, #tpu.memory_space<smem>>
    %c0_81 = arith.constant 0 : index
    %c2_82 = arith.constant 2 : index
    %c0_83 = arith.constant 0 : index
    %102 = vector.load %arg2[%c0_81, %c2_82, %c0_83] : memref<2x4x256xf32, #tpu.memory_space<vmem>>, vector<2x1x256xf32>
    %103 = vector.shape_cast %102 : vector<2x1x256xf32> to vector<2x256xf32>
    %104 = vector.broadcast %101 : f32 to vector<2x256xf32>
    %105 = arith.mulf %104, %103 : vector<2x256xf32>
    %106 = arith.addf %100, %105 : vector<2x256xf32>
    %c3_84 = arith.constant 3 : index
    %c3_85 = arith.constant 3 : index
    %107 = memref.load %arg3[%c3_84, %c3_85] : memref<8x4xf32, #tpu.memory_space<smem>>
    %c0_86 = arith.constant 0 : index
    %c3_87 = arith.constant 3 : index
    %c0_88 = arith.constant 0 : index
    %108 = vector.load %arg2[%c0_86, %c3_87, %c0_88] : memref<2x4x256xf32, #tpu.memory_space<vmem>>, vector<2x1x256xf32>
    %109 = vector.shape_cast %108 : vector<2x1x256xf32> to vector<2x256xf32>
    %110 = vector.broadcast %107 : f32 to vector<2x256xf32>
    %111 = arith.mulf %110, %109 : vector<2x256xf32>
    %112 = arith.addf %106, %111 : vector<2x256xf32>
    %c0_89 = arith.constant 0 : index
    %c3_90 = arith.constant 3 : index
    %c0_91 = arith.constant 0 : index
    %113 = vector.load %arg5[%c0_89, %c3_90, %c0_91] : memref<2x8x256xf32, #tpu.memory_space<vmem>>, vector<2x1x256xf32>
    %114 = vector.shape_cast %113 : vector<2x1x256xf32> to vector<2x256xf32>
    %115 = vector.shape_cast %112 : vector<2x256xf32> to vector<2x1x256xf32>
    tpu.vector_store %arg5[%c0_89, %c3_90, %c0_91], %115 {strides = array<i32>} : memref<2x8x256xf32, #tpu.memory_space<vmem>>, vector<2x1x256xf32>,
    %c4 = arith.constant 4 : index
    %c0_92 = arith.constant 0 : index
    %116 = memref.load %arg3[%c4, %c0_92] : memref<8x4xf32, #tpu.memory_space<smem>>
    %c0_93 = arith.constant 0 : index
    %c0_94 = arith.constant 0 : index
    %c0_95 = arith.constant 0 : index
    %117 = vector.load %arg2[%c0_93, %c0_94, %c0_95] : memref<2x4x256xf32, #tpu.memory_space<vmem>>, vector<2x1x256xf32>
    %118 = vector.shape_cast %117 : vector<2x1x256xf32> to vector<2x256xf32>
    %119 = vector.broadcast %116 : f32 to vector<2x256xf32>
    %120 = arith.mulf %119, %118 : vector<2x256xf32>
    %c4_96 = arith.constant 4 : index
    %121 = memref.load %arg4[%c4_96] : memref<8xf32, #tpu.memory_space<smem>>
    %122 = vector.broadcast %121 : f32 to vector<2x256xf32>
    %123 = arith.addf %120, %122 : vector<2x256xf32>
    %c4_97 = arith.constant 4 : index
    %c1_98 = arith.constant 1 : index
    %124 = memref.load %arg3[%c4_97, %c1_98] : memref<8x4xf32, #tpu.memory_space<smem>>
    %c0_99 = arith.constant 0 : index
    %c1_100 = arith.constant 1 : index
    %c0_101 = arith.constant 0 : index
    %125 = vector.load %arg2[%c0_99, %c1_100, %c0_101] : memref<2x4x256xf32, #tpu.memory_space<vmem>>, vector<2x1x256xf32>
    %126 = vector.shape_cast %125 : vector<2x1x256xf32> to vector<2x256xf32>
    %127 = vector.broadcast %124 : f32 to vector<2x256xf32>
    %128 = arith.mulf %127, %126 : vector<2x256xf32>
    %129 = arith.addf %123, %128 : vector<2x256xf32>
    %c4_102 = arith.constant 4 : index
    %c2_103 = arith.constant 2 : index
    %130 = memref.load %arg3[%c4_102, %c2_103] : memref<8x4xf32, #tpu.memory_space<smem>>
    %c0_104 = arith.constant 0 : index
    %c2_105 = arith.constant 2 : index
    %c0_106 = arith.constant 0 : index
    %131 = vector.load %arg2[%c0_104, %c2_105, %c0_106] : memref<2x4x256xf32, #tpu.memory_space<vmem>>, vector<2x1x256xf32>
    %132 = vector.shape_cast %131 : vector<2x1x256xf32> to vector<2x256xf32>
    %133 = vector.broadcast %130 : f32 to vector<2x256xf32>
    %134 = arith.mulf %133, %132 : vector<2x256xf32>
    %135 = arith.addf %129, %134 : vector<2x256xf32>
    %c4_107 = arith.constant 4 : index
    %c3_108 = arith.constant 3 : index
    %136 = memref.load %arg3[%c4_107, %c3_108] : memref<8x4xf32, #tpu.memory_space<smem>>
    %c0_109 = arith.constant 0 : index
    %c3_110 = arith.constant 3 : index
    %c0_111 = arith.constant 0 : index
    %137 = vector.load %arg2[%c0_109, %c3_110, %c0_111] : memref<2x4x256xf32, #tpu.memory_space<vmem>>, vector<2x1x256xf32>
    %138 = vector.shape_cast %137 : vector<2x1x256xf32> to vector<2x256xf32>
    %139 = vector.broadcast %136 : f32 to vector<2x256xf32>
    %140 = arith.mulf %139, %138 : vector<2x256xf32>
    %141 = arith.addf %135, %140 : vector<2x256xf32>
    %c0_112 = arith.constant 0 : index
    %c4_113 = arith.constant 4 : index
    %c0_114 = arith.constant 0 : index
    %142 = vector.load %arg5[%c0_112, %c4_113, %c0_114] : memref<2x8x256xf32, #tpu.memory_space<vmem>>, vector<2x1x256xf32>
    %143 = vector.shape_cast %142 : vector<2x1x256xf32> to vector<2x256xf32>
    %144 = vector.shape_cast %141 : vector<2x256xf32> to vector<2x1x256xf32>
    tpu.vector_store %arg5[%c0_112, %c4_113, %c0_114], %144 {strides = array<i32>} : memref<2x8x256xf32, #tpu.memory_space<vmem>>, vector<2x1x256xf32>,
    %c5 = arith.constant 5 : index
    %c0_115 = arith.constant 0 : index
    %145 = memref.load %arg3[%c5, %c0_115] : memref<8x4xf32, #tpu.memory_space<smem>>
    %c0_116 = arith.constant 0 : index
    %c0_117 = arith.constant 0 : index
    %c0_118 = arith.constant 0 : index
    %146 = vector.load %arg2[%c0_116, %c0_117, %c0_118] : memref<2x4x256xf32, #tpu.memory_space<vmem>>, vector<2x1x256xf32>
    %147 = vector.shape_cast %146 : vector<2x1x256xf32> to vector<2x256xf32>
    %148 = vector.broadcast %145 : f32 to vector<2x256xf32>
    %149 = arith.mulf %148, %147 : vector<2x256xf32>
    %c5_119 = arith.constant 5 : index
    %150 = memref.load %arg4[%c5_119] : memref<8xf32, #tpu.memory_space<smem>>
    %151 = vector.broadcast %150 : f32 to vector<2x256xf32>
    %152 = arith.addf %149, %151 : vector<2x256xf32>
    %c5_120 = arith.constant 5 : index
    %c1_121 = arith.constant 1 : index
    %153 = memref.load %arg3[%c5_120, %c1_121] : memref<8x4xf32, #tpu.memory_space<smem>>
    %c0_122 = arith.constant 0 : index
    %c1_123 = arith.constant 1 : index
    %c0_124 = arith.constant 0 : index
    %154 = vector.load %arg2[%c0_122, %c1_123, %c0_124] : memref<2x4x256xf32, #tpu.memory_space<vmem>>, vector<2x1x256xf32>
    %155 = vector.shape_cast %154 : vector<2x1x256xf32> to vector<2x256xf32>
    %156 = vector.broadcast %153 : f32 to vector<2x256xf32>
    %157 = arith.mulf %156, %155 : vector<2x256xf32>
    %158 = arith.addf %152, %157 : vector<2x256xf32>
    %c5_125 = arith.constant 5 : index
    %c2_126 = arith.constant 2 : index
    %159 = memref.load %arg3[%c5_125, %c2_126] : memref<8x4xf32, #tpu.memory_space<smem>>
    %c0_127 = arith.constant 0 : index
    %c2_128 = arith.constant 2 : index
    %c0_129 = arith.constant 0 : index
    %160 = vector.load %arg2[%c0_127, %c2_128, %c0_129] : memref<2x4x256xf32, #tpu.memory_space<vmem>>, vector<2x1x256xf32>
    %161 = vector.shape_cast %160 : vector<2x1x256xf32> to vector<2x256xf32>
    %162 = vector.broadcast %159 : f32 to vector<2x256xf32>
    %163 = arith.mulf %162, %161 : vector<2x256xf32>
    %164 = arith.addf %158, %163 : vector<2x256xf32>
    %c5_130 = arith.constant 5 : index
    %c3_131 = arith.constant 3 : index
    %165 = memref.load %arg3[%c5_130, %c3_131] : memref<8x4xf32, #tpu.memory_space<smem>>
    %c0_132 = arith.constant 0 : index
    %c3_133 = arith.constant 3 : index
    %c0_134 = arith.constant 0 : index
    %166 = vector.load %arg2[%c0_132, %c3_133, %c0_134] : memref<2x4x256xf32, #tpu.memory_space<vmem>>, vector<2x1x256xf32>
    %167 = vector.shape_cast %166 : vector<2x1x256xf32> to vector<2x256xf32>
    %168 = vector.broadcast %165 : f32 to vector<2x256xf32>
    %169 = arith.mulf %168, %167 : vector<2x256xf32>
    %170 = arith.addf %164, %169 : vector<2x256xf32>
    %c0_135 = arith.constant 0 : index
    %c5_136 = arith.constant 5 : index
    %c0_137 = arith.constant 0 : index
    %171 = vector.load %arg5[%c0_135, %c5_136, %c0_137] : memref<2x8x256xf32, #tpu.memory_space<vmem>>, vector<2x1x256xf32>
    %172 = vector.shape_cast %171 : vector<2x1x256xf32> to vector<2x256xf32>
    %173 = vector.shape_cast %170 : vector<2x256xf32> to vector<2x1x256xf32>
    tpu.vector_store %arg5[%c0_135, %c5_136, %c0_137], %173 {strides = array<i32>} : memref<2x8x256xf32, #tpu.memory_space<vmem>>, vector<2x1x256xf32>,
    %c6 = arith.constant 6 : index
    %c0_138 = arith.constant 0 : index
    %174 = memref.load %arg3[%c6, %c0_138] : memref<8x4xf32, #tpu.memory_space<smem>>
    %c0_139 = arith.constant 0 : index
    %c0_140 = arith.constant 0 : index
    %c0_141 = arith.constant 0 : index
    %175 = vector.load %arg2[%c0_139, %c0_140, %c0_141] : memref<2x4x256xf32, #tpu.memory_space<vmem>>, vector<2x1x256xf32>
    %176 = vector.shape_cast %175 : vector<2x1x256xf32> to vector<2x256xf32>
    %177 = vector.broadcast %174 : f32 to vector<2x256xf32>
    %178 = arith.mulf %177, %176 : vector<2x256xf32>
    %c6_142 = arith.constant 6 : index
    %179 = memref.load %arg4[%c6_142] : memref<8xf32, #tpu.memory_space<smem>>
    %180 = vector.broadcast %179 : f32 to vector<2x256xf32>
    %181 = arith.addf %178, %180 : vector<2x256xf32>
    %c6_143 = arith.constant 6 : index
    %c1_144 = arith.constant 1 : index
    %182 = memref.load %arg3[%c6_143, %c1_144] : memref<8x4xf32, #tpu.memory_space<smem>>
    %c0_145 = arith.constant 0 : index
    %c1_146 = arith.constant 1 : index
    %c0_147 = arith.constant 0 : index
    %183 = vector.load %arg2[%c0_145, %c1_146, %c0_147] : memref<2x4x256xf32, #tpu.memory_space<vmem>>, vector<2x1x256xf32>
    %184 = vector.shape_cast %183 : vector<2x1x256xf32> to vector<2x256xf32>
    %185 = vector.broadcast %182 : f32 to vector<2x256xf32>
    %186 = arith.mulf %185, %184 : vector<2x256xf32>
    %187 = arith.addf %181, %186 : vector<2x256xf32>
    %c6_148 = arith.constant 6 : index
    %c2_149 = arith.constant 2 : index
    %188 = memref.load %arg3[%c6_148, %c2_149] : memref<8x4xf32, #tpu.memory_space<smem>>
    %c0_150 = arith.constant 0 : index
    %c2_151 = arith.constant 2 : index
    %c0_152 = arith.constant 0 : index
    %189 = vector.load %arg2[%c0_150, %c2_151, %c0_152] : memref<2x4x256xf32, #tpu.memory_space<vmem>>, vector<2x1x256xf32>
    %190 = vector.shape_cast %189 : vector<2x1x256xf32> to vector<2x256xf32>
    %191 = vector.broadcast %188 : f32 to vector<2x256xf32>
    %192 = arith.mulf %191, %190 : vector<2x256xf32>
    %193 = arith.addf %187, %192 : vector<2x256xf32>
    %c6_153 = arith.constant 6 : index
    %c3_154 = arith.constant 3 : index
    %194 = memref.load %arg3[%c6_153, %c3_154] : memref<8x4xf32, #tpu.memory_space<smem>>
    %c0_155 = arith.constant 0 : index
    %c3_156 = arith.constant 3 : index
    %c0_157 = arith.constant 0 : index
    %195 = vector.load %arg2[%c0_155, %c3_156, %c0_157] : memref<2x4x256xf32, #tpu.memory_space<vmem>>, vector<2x1x256xf32>
    %196 = vector.shape_cast %195 : vector<2x1x256xf32> to vector<2x256xf32>
    %197 = vector.broadcast %194 : f32 to vector<2x256xf32>
    %198 = arith.mulf %197, %196 : vector<2x256xf32>
    %199 = arith.addf %193, %198 : vector<2x256xf32>
    %c0_158 = arith.constant 0 : index
    %c6_159 = arith.constant 6 : index
    %c0_160 = arith.constant 0 : index
    %200 = vector.load %arg5[%c0_158, %c6_159, %c0_160] : memref<2x8x256xf32, #tpu.memory_space<vmem>>, vector<2x1x256xf32>
    %201 = vector.shape_cast %200 : vector<2x1x256xf32> to vector<2x256xf32>
    %202 = vector.shape_cast %199 : vector<2x256xf32> to vector<2x1x256xf32>
    tpu.vector_store %arg5[%c0_158, %c6_159, %c0_160], %202 {strides = array<i32>} : memref<2x8x256xf32, #tpu.memory_space<vmem>>, vector<2x1x256xf32>,
    %c7 = arith.constant 7 : index
    %c0_161 = arith.constant 0 : index
    %203 = memref.load %arg3[%c7, %c0_161] : memref<8x4xf32, #tpu.memory_space<smem>>
    %c0_162 = arith.constant 0 : index
    %c0_163 = arith.constant 0 : index
    %c0_164 = arith.constant 0 : index
    %204 = vector.load %arg2[%c0_162, %c0_163, %c0_164] : memref<2x4x256xf32, #tpu.memory_space<vmem>>, vector<2x1x256xf32>
    %205 = vector.shape_cast %204 : vector<2x1x256xf32> to vector<2x256xf32>
    %206 = vector.broadcast %203 : f32 to vector<2x256xf32>
    %207 = arith.mulf %206, %205 : vector<2x256xf32>
    %c7_165 = arith.constant 7 : index
    %208 = memref.load %arg4[%c7_165] : memref<8xf32, #tpu.memory_space<smem>>
    %209 = vector.broadcast %208 : f32 to vector<2x256xf32>
    %210 = arith.addf %207, %209 : vector<2x256xf32>
    %c7_166 = arith.constant 7 : index
    %c1_167 = arith.constant 1 : index
    %211 = memref.load %arg3[%c7_166, %c1_167] : memref<8x4xf32, #tpu.memory_space<smem>>
    %c0_168 = arith.constant 0 : index
    %c1_169 = arith.constant 1 : index
    %c0_170 = arith.constant 0 : index
    %212 = vector.load %arg2[%c0_168, %c1_169, %c0_170] : memref<2x4x256xf32, #tpu.memory_space<vmem>>, vector<2x1x256xf32>
    %213 = vector.shape_cast %212 : vector<2x1x256xf32> to vector<2x256xf32>
    %214 = vector.broadcast %211 : f32 to vector<2x256xf32>
    %215 = arith.mulf %214, %213 : vector<2x256xf32>
    %216 = arith.addf %210, %215 : vector<2x256xf32>
    %c7_171 = arith.constant 7 : index
    %c2_172 = arith.constant 2 : index
    %217 = memref.load %arg3[%c7_171, %c2_172] : memref<8x4xf32, #tpu.memory_space<smem>>
    %c0_173 = arith.constant 0 : index
    %c2_174 = arith.constant 2 : index
    %c0_175 = arith.constant 0 : index
    %218 = vector.load %arg2[%c0_173, %c2_174, %c0_175] : memref<2x4x256xf32, #tpu.memory_space<vmem>>, vector<2x1x256xf32>
    %219 = vector.shape_cast %218 : vector<2x1x256xf32> to vector<2x256xf32>
    %220 = vector.broadcast %217 : f32 to vector<2x256xf32>
    %221 = arith.mulf %220, %219 : vector<2x256xf32>
    %222 = arith.addf %216, %221 : vector<2x256xf32>
    %c7_176 = arith.constant 7 : index
    %c3_177 = arith.constant 3 : index
    %223 = memref.load %arg3[%c7_176, %c3_177] : memref<8x4xf32, #tpu.memory_space<smem>>
    %c0_178 = arith.constant 0 : index
    %c3_179 = arith.constant 3 : index
    %c0_180 = arith.constant 0 : index
    %224 = vector.load %arg2[%c0_178, %c3_179, %c0_180] : memref<2x4x256xf32, #tpu.memory_space<vmem>>, vector<2x1x256xf32>
    %225 = vector.shape_cast %224 : vector<2x1x256xf32> to vector<2x256xf32>
    %226 = vector.broadcast %223 : f32 to vector<2x256xf32>
    %227 = arith.mulf %226, %225 : vector<2x256xf32>
    %228 = arith.addf %222, %227 : vector<2x256xf32>
    %c0_181 = arith.constant 0 : index
    %c7_182 = arith.constant 7 : index
    %c0_183 = arith.constant 0 : index
    %229 = vector.load %arg5[%c0_181, %c7_182, %c0_183] : memref<2x8x256xf32, #tpu.memory_space<vmem>>, vector<2x1x256xf32>
    %230 = vector.shape_cast %229 : vector<2x1x256xf32> to vector<2x256xf32>
    %231 = vector.shape_cast %228 : vector<2x256xf32> to vector<2x1x256xf32>
    tpu.vector_store %arg5[%c0_181, %c7_182, %c0_183], %231 {strides = array<i32>} : memref<2x8x256xf32, #tpu.memory_space<vmem>>, vector<2x1x256xf32>,
    return
  }
  func.func @transform_0(%arg0: i32, %arg1: i32) -> (i32, i32, i32) {
    %c0_i32 = arith.constant 0 : i32
    %c0_i32_0 = arith.constant 0 : i32
    return %arg0, %c0_i32, %arg1 : i32, i32, i32
  }
  func.func @transform_1(%arg0: i32, %arg1: i32) -> (i32, i32) {
    %c0_i32 = arith.constant 0 : i32
    %c0_i32_0 = arith.constant 0 : i32
    %c0_i32_1 = arith.constant 0 : i32
    return %c0_i32, %c0_i32_0 : i32, i32
  }
  func.func @transform_2(%arg0: i32, %arg1: i32) -> i32 {
    %c0_i32 = arith.constant 0 : i32
    %c0_i32_0 = arith.constant 0 : i32
    return %c0_i32 : i32
  }
  func.func @transform_3(%arg0: i32, %arg1: i32) -> (i32, i32, i32) {
    %c0_i32 = arith.constant 0 : i32
    %c0_i32_0 = arith.constant 0 : i32
    return %arg0, %c0_i32, %arg1 : i32, i32, i32
  }
}

</mosaic_0001>

<llo_original>
// kernel: feature_map_forward.1
$region0: #{feature_map_forward.1}
  #allocation0 [shape = 'u32[]', space=smem, size = 0x4, offset = 0x4, fixed_abs, tag = 'smem constant byte address 0x4 - core index']
  #allocation1 [shape = 'u32[144,128]{1,0:T(1,128)}', space=vmem, size = 0x12000, scoped, tag = 'internal scratch']
  %s0 = inlined_call_operand.vmem [shape: f32[2,4,256], index: 0, kind: input, shape index: {}]
  %s1 = inlined_call_operand.vmem [shape: f32[8,4], index: 1, kind: input, shape index: {}]
  %s2 = inlined_call_operand.vmem [shape: f32[8], index: 2, kind: input, shape index: {}]
  %s3 = inlined_call_operand.vmem [shape: f32[2,8,256], index: 3, kind: output, shape index: {}]
  %s4 = sld [smem:[#allocation0]]
  $region30: #{feature_map_forward.1} parent=0
    _
  %s6 = ssub.s32 1, %s4
  %s7 = scalar_select 0, %s6, %s4
  $region1: #{feature_map_forward.1} parent=0
    #allocation2 [shape = 'u8[4096]{0}', space=smem, size = 0x1000, scoped, tag = 'input window, operand 1, single buffered']
    #allocation3 [shape = 's32[1]{0}', space=sflag, size = 0x4, scoped, tag = 'scoped memory for feature_map_forward.1']
    #allocation4 [shape = 'u8[512]{0}', space=smem, size = 0x200, scoped, tag = 'input window, operand 2, single buffered']
    #allocation5 [shape = 's32[1]{0}', space=sflag, size = 0x4, scoped, tag = 'scoped memory for feature_map_forward.1']
    %8 = vsyncpa [#allocation3], 0
    %9 = vsyncpa [#allocation5], 0
    // Predicated region
    $region2: #{feature_map_forward.1} parent=1 // pred_check
      _
    $region3: #{feature_map_forward.1} parent=1 // pred_check_branch
      %11 = sbr.rel (0) target = $region5
    $region4: #{feature_map_forward.1} parent=1 // pred_region
      _
    $region5: #{feature_map_forward.1} parent=1 // pred_fallthru
      _
    // Predicated region
    $region6: #{feature_map_forward.1} parent=1 // pred_check
      _
    $region7: #{feature_map_forward.1} parent=1 // pred_check_branch
      %13 = sbr.rel (0) target = $region9
    $region8: #{feature_map_forward.1} parent=1 // pred_region
      %s15 = ssub.s32 128, 128
      %16 = vsyncadd [#allocation3], %s15
      %s18 = sshll.u32 %s1, 4
      %s19 = int_to_ptr.vmem [resolvable:$true] %s18
      %21 = dma.vmem_to_smem %s19, 128, [#allocation2], [#allocation3]
    $region9: #{feature_map_forward.1} parent=1 // pred_fallthru
      _
    // Predicated region
    $region10: #{feature_map_forward.1} parent=1 // pred_check
      _
    $region11: #{feature_map_forward.1} parent=1 // pred_check_branch
      %23 = sbr.rel (0) target = $region13
    $region12: #{feature_map_forward.1} parent=1 // pred_region
      %s25 = ssub.s32 16, 16
      %26 = vsyncadd [#allocation5], %s25
      %s28 = sshll.u32 %s2, 4
      %s29 = int_to_ptr.vmem [resolvable:$true] %s28
      %31 = dma.vmem_to_smem %s29, 16, [#allocation4], [#allocation5]
    $region13: #{feature_map_forward.1} parent=1 // pred_fallthru
      _
    // Predicated region
    $region14: #{feature_map_forward.1} parent=1 // pred_check
      _
    $region15: #{feature_map_forward.1} parent=1 // pred_check_branch
      %33 = sbr.rel (0) target = $region17
    $region16: #{feature_map_forward.1} parent=1 // pred_region
      %34 = dma.done [#allocation3], 128
    $region17: #{feature_map_forward.1} parent=1 // pred_fallthru
      _
    // Predicated region
    $region18: #{feature_map_forward.1} parent=1 // pred_check
      _
    $region19: #{feature_map_forward.1} parent=1 // pred_check_branch
      %36 = sbr.rel (0) target = $region21
    $region20: #{feature_map_forward.1} parent=1 // pred_region
      %37 = dma.done [#allocation5], 16
    $region21: #{feature_map_forward.1} parent=1 // pred_fallthru
      _
    %38 = sfence
    %s39 = sld [smem:[#allocation2]]
    %v40 = vld [vmem:[%s0] ss:$4 sm:$0x3]
    %s41 = scalar_lea.vmem %s0, 8
    %v42 = vld [vmem:[%s41] ss:$4 sm:$0x3]
    %v43 = vstv %s39
    %v44 = vmul.f32 %v43, %v40
    %v45 = vmul.f32 %v43, %v42
    %s46 = sld [smem:[#allocation4]]
    %v47 = vstv %s46
    %v48 = vadd.f32 %v44, %v47
    %v49 = vadd.f32 %v45, %v47
    %s50 = sld [smem:[#allocation2 + $0x1]]
    %s51 = scalar_lea.vmem %s0, 1
    %v52 = vld [vmem:[%s51] ss:$4 sm:$0x3]
    %s53 = scalar_lea.vmem %s0, 9
    %v54 = vld [vmem:[%s53] ss:$4 sm:$0x3]
    %v55 = vstv %s50
    %v56 = vmul.f32 %v55, %v52
    %v57 = vmul.f32 %v55, %v54
    %v58 = vadd.f32 %v48, %v56
    %v59 = vadd.f32 %v49, %v57
    %s60 = sld [smem:[#allocation2 + $0x2]]
    %s61 = scalar_lea.vmem %s0, 2
    %v62 = vld [vmem:[%s61] ss:$4 sm:$0x3]
    %s63 = scalar_lea.vmem %s0, 10
    %v64 = vld [vmem:[%s63] ss:$4 sm:$0x3]
    %v65 = vstv %s60
    %v66 = vmul.f32 %v65, %v62
    %v67 = vmul.f32 %v65, %v64
    %v68 = vadd.f32 %v58, %v66
    %v69 = vadd.f32 %v59, %v67
    %s70 = sld [smem:[#allocation2 + $0x3]]
    %s71 = scalar_lea.vmem %s0, 3
    %v72 = vld [vmem:[%s71] ss:$4 sm:$0x3]
    %s73 = scalar_lea.vmem %s0, 11
    %v74 = vld [vmem:[%s73] ss:$4 sm:$0x3]
    %v75 = vstv %s70
    %v76 = vmul.f32 %v75, %v72
    %v77 = vmul.f32 %v75, %v74
    %v78 = vadd.f32 %v68, %v76
    %v79 = vadd.f32 %v69, %v77
    %v80 = vlaneseq
    %vm81 = vcmp.ge.s32.totalorder %v80, 0
    %vm82 = vcmp.lt.s32.totalorder %v80, 256
    %vm83 = vmand %vm81, %vm82
    %84 = vst.msk [vmem:[%s3] ss:$8 sm:$0x3] %vm83, %v78
    %85 = vst.msk [vmem:[%s3] ss:$8 sm:$0x0] %vm83, %v78
    %s86 = scalar_lea.vmem %s3, 16
    %87 = vst.msk [vmem:[%s86] ss:$8 sm:$0x3] %vm83, %v79
    %88 = vst.msk [vmem:[%s86] ss:$8 sm:$0x0] %vm83, %v79
    %s89 = sld [smem:[#allocation2 + $0x80]]
    %v90 = vld [vmem:[%s0] ss:$4 sm:$0x3]
    %v91 = vld [vmem:[%s41] ss:$4 sm:$0x3]
    %v92 = vstv %s89
    %v93 = vmul.f32 %v92, %v90
    %v94 = vmul.f32 %v92, %v91
    %s95 = sld [smem:[#allocation4 + $0x1]]
    %v96 = vstv %s95
    %v97 = vadd.f32 %v93, %v96
    %v98 = vadd.f32 %v94, %v96
    %s99 = sld [smem:[#allocation2 + $0x81]]
    %v100 = vld [vmem:[%s51] ss:$4 sm:$0x3]
    %v101 = vld [vmem:[%s53] ss:$4 sm:$0x3]
    %v102 = vstv %s99
    %v103 = vmul.f32 %v102, %v100
    %v104 = vmul.f32 %v102, %v101
    %v105 = vadd.f32 %v97, %v103
    %v106 = vadd.f32 %v98, %v104
    %s107 = sld [smem:[#allocation2 + $0x82]]
    %v108 = vld [vmem:[%s61] ss:$4 sm:$0x3]
    %v109 = vld [vmem:[%s63] ss:$4 sm:$0x3]
    %v110 = vstv %s107
    %v111 = vmul.f32 %v110, %v108
    %v112 = vmul.f32 %v110, %v109
    %v113 = vadd.f32 %v105, %v111
    %v114 = vadd.f32 %v106, %v112
    %s115 = sld [smem:[#allocation2 + $0x83]]
    %v116 = vld [vmem:[%s71] ss:$4 sm:$0x3]
    %v117 = vld [vmem:[%s73] ss:$4 sm:$0x3]
    %v118 = vstv %s115
    %v119 = vmul.f32 %v118, %v116
    %v120 = vmul.f32 %v118, %v117
    %v121 = vadd.f32 %v113, %v119
    %v122 = vadd.f32 %v114, %v120
    %s123 = scalar_lea.vmem %s3, 1
    %124 = vst.msk [vmem:[%s123] ss:$8 sm:$0x3] %vm83, %v121
    %125 = vst.msk [vmem:[%s123] ss:$8 sm:$0x0] %vm83, %v121
    %s126 = scalar_lea.vmem %s3, 17
    %127 = vst.msk [vmem:[%s126] ss:$8 sm:$0x3] %vm83, %v122
    %128 = vst.msk [vmem:[%s126] ss:$8 sm:$0x0] %vm83, %v122
    %s129 = sld [smem:[#allocation2 + $0x100]]
    %v130 = vld [vmem:[%s0] ss:$4 sm:$0x3]
    %v131 = vld [vmem:[%s41] ss:$4 sm:$0x3]
    %v132 = vstv %s129
    %v133 = vmul.f32 %v132, %v130
    %v134 = vmul.f32 %v132, %v131
    %s135 = sld [smem:[#allocation4 + $0x2]]
    %v136 = vstv %s135
    %v137 = vadd.f32 %v133, %v136
    %v138 = vadd.f32 %v134, %v136
    %s139 = sld [smem:[#allocation2 + $0x101]]
    %v140 = vld [vmem:[%s51] ss:$4 sm:$0x3]
    %v141 = vld [vmem:[%s53] ss:$4 sm:$0x3]
    %v142 = vstv %s139
    %v143 = vmul.f32 %v142, %v140
    %v144 = vmul.f32 %v142, %v141
    %v145 = vadd.f32 %v137, %v143
    %v146 = vadd.f32 %v138, %v144
    %s147 = sld [smem:[#allocation2 + $0x102]]
    %v148 = vld [vmem:[%s61] ss:$4 sm:$0x3]
    %v149 = vld [vmem:[%s63] ss:$4 sm:$0x3]
    %v150 = vstv %s147
    %v151 = vmul.f32 %v150, %v148
    %v152 = vmul.f32 %v150, %v149
    %v153 = vadd.f32 %v145, %v151
    %v154 = vadd.f32 %v146, %v152
    %s155 = sld [smem:[#allocation2 + $0x103]]
    %v156 = vld [vmem:[%s71] ss:$4 sm:$0x3]
    %v157 = vld [vmem:[%s73] ss:$4 sm:$0x3]
    %v158 = vstv %s155
    %v159 = vmul.f32 %v158, %v156
    %v160 = vmul.f32 %v158, %v157
    %v161 = vadd.f32 %v153, %v159
    %v162 = vadd.f32 %v154, %v160
    %s163 = scalar_lea.vmem %s3, 2
    %164 = vst.msk [vmem:[%s163] ss:$8 sm:$0x3] %vm83, %v161
    %165 = vst.msk [vmem:[%s163] ss:$8 sm:$0x0] %vm83, %v161
    %s166 = scalar_lea.vmem %s3, 18
    %167 = vst.msk [vmem:[%s166] ss:$8 sm:$0x3] %vm83, %v162
    %168 = vst.msk [vmem:[%s166] ss:$8 sm:$0x0] %vm83, %v162
    %s169 = sld [smem:[#allocation2 + $0x180]]
    %v170 = vld [vmem:[%s0] ss:$4 sm:$0x3]
    %v171 = vld [vmem:[%s41] ss:$4 sm:$0x3]
    %v172 = vstv %s169
    %v173 = vmul.f32 %v172, %v170
    %v174 = vmul.f32 %v172, %v171
    %s175 = sld [smem:[#allocation4 + $0x3]]
    %v176 = vstv %s175
    %v177 = vadd.f32 %v173, %v176
    %v178 = vadd.f32 %v174, %v176
    %s179 = sld [smem:[#allocation2 + $0x181]]
    %v180 = vld [vmem:[%s51] ss:$4 sm:$0x3]
    %v181 = vld [vmem:[%s53] ss:$4 sm:$0x3]
    %v182 = vstv %s179
    %v183 = vmul.f32 %v182, %v180
    %v184 = vmul.f32 %v182, %v181
    %v185 = vadd.f32 %v177, %v183
    %v186 = vadd.f32 %v178, %v184
    %s187 = sld [smem:[#allocation2 + $0x182]]
    %v188 = vld [vmem:[%s61] ss:$4 sm:$0x3]
    %v189 = vld [vmem:[%s63] ss:$4 sm:$0x3]
    %v190 = vstv %s187
    %v191 = vmul.f32 %v190, %v188
    %v192 = vmul.f32 %v190, %v189
    %v193 = vadd.f32 %v185, %v191
    %v194 = vadd.f32 %v186, %v192
    %s195 = sld [smem:[#allocation2 + $0x183]]
    %v196 = vld [vmem:[%s71] ss:$4 sm:$0x3]
    %v197 = vld [vmem:[%s73] ss:$4 sm:$0x3]
    %v198 = vstv %s195
    %v199 = vmul.f32 %v198, %v196
    %v200 = vmul.f32 %v198, %v197
    %v201 = vadd.f32 %v193, %v199
    %v202 = vadd.f32 %v194, %v200
    %s203 = scalar_lea.vmem %s3, 3
    %204 = vst.msk [vmem:[%s203] ss:$8 sm:$0x3] %vm83, %v201
    %205 = vst.msk [vmem:[%s203] ss:$8 sm:$0x0] %vm83, %v201
    %s206 = scalar_lea.vmem %s3, 19
    %207 = vst.msk [vmem:[%s206] ss:$8 sm:$0x3] %vm83, %v202
    %208 = vst.msk [vmem:[%s206] ss:$8 sm:$0x0] %vm83, %v202
    %s209 = sld [smem:[#allocation2 + $0x200]]
    %v210 = vld [vmem:[%s0] ss:$4 sm:$0x3]
    %v211 = vld [vmem:[%s41] ss:$4 sm:$0x3]
    %v212 = vstv %s209
    %v213 = vmul.f32 %v212, %v210
    %v214 = vmul.f32 %v212, %v211
    %s215 = sld [smem:[#allocation4 + $0x4]]
    %v216 = vstv %s215
    %v217 = vadd.f32 %v213, %v216
    %v218 = vadd.f32 %v214, %v216
    %s219 = sld [smem:[#allocation2 + $0x201]]
    %v220 = vld [vmem:[%s51] ss:$4 sm:$0x3]
    %v221 = vld [vmem:[%s53] ss:$4 sm:$0x3]
    %v222 = vstv %s219
    %v223 = vmul.f32 %v222, %v220
    %v224 = vmul.f32 %v222, %v221
    %v225 = vadd.f32 %v217, %v223
    %v226 = vadd.f32 %v218, %v224
    %s227 = sld [smem:[#allocation2 + $0x202]]
    %v228 = vld [vmem:[%s61] ss:$4 sm:$0x3]
    %v229 = vld [vmem:[%s63] ss:$4 sm:$0x3]
    %v230 = vstv %s227
    %v231 = vmul.f32 %v230, %v228
    %v232 = vmul.f32 %v230, %v229
    %v233 = vadd.f32 %v225, %v231
    %v234 = vadd.f32 %v226, %v232
    %s235 = sld [smem:[#allocation2 + $0x203]]
    %v236 = vld [vmem:[%s71] ss:$4 sm:$0x3]
    %v237 = vld [vmem:[%s73] ss:$4 sm:$0x3]
    %v238 = vstv %s235
    %v239 = vmul.f32 %v238, %v236
    %v240 = vmul.f32 %v238, %v237
    %v241 = vadd.f32 %v233, %v239
    %v242 = vadd.f32 %v234, %v240
    %s243 = scalar_lea.vmem %s3, 4
    %244 = vst.msk [vmem:[%s243] ss:$8 sm:$0x3] %vm83, %v241
    %245 = vst.msk [vmem:[%s243] ss:$8 sm:$0x0] %vm83, %v241
    %s246 = scalar_lea.vmem %s3, 20
    %247 = vst.msk [vmem:[%s246] ss:$8 sm:$0x3] %vm83, %v242
    %248 = vst.msk [vmem:[%s246] ss:$8 sm:$0x0] %vm83, %v242
    %s249 = sld [smem:[#allocation2 + $0x280]]
    %v250 = vld [vmem:[%s0] ss:$4 sm:$0x3]
    %v251 = vld [vmem:[%s41] ss:$4 sm:$0x3]
    %v252 = vstv %s249
    %v253 = vmul.f32 %v252, %v250
    %v254 = vmul.f32 %v252, %v251
    %s255 = sld [smem:[#allocation4 + $0x5]]
    %v256 = vstv %s255
    %v257 = vadd.f32 %v253, %v256
    %v258 = vadd.f32 %v254, %v256
    %s259 = sld [smem:[#allocation2 + $0x281]]
    %v260 = vld [vmem:[%s51] ss:$4 sm:$0x3]
    %v261 = vld [vmem:[%s53] ss:$4 sm:$0x3]
    %v262 = vstv %s259
    %v263 = vmul.f32 %v262, %v260
    %v264 = vmul.f32 %v262, %v261
    %v265 = vadd.f32 %v257, %v263
    %v266 = vadd.f32 %v258, %v264
    %s267 = sld [smem:[#allocation2 + $0x282]]
    %v268 = vld [vmem:[%s61] ss:$4 sm:$0x3]
    %v269 = vld [vmem:[%s63] ss:$4 sm:$0x3]
    %v270 = vstv %s267
    %v271 = vmul.f32 %v270, %v268
    %v272 = vmul.f32 %v270, %v269
    %v273 = vadd.f32 %v265, %v271
    %v274 = vadd.f32 %v266, %v272
    %s275 = sld [smem:[#allocation2 + $0x283]]
    %v276 = vld [vmem:[%s71] ss:$4 sm:$0x3]
    %v277 = vld [vmem:[%s73] ss:$4 sm:$0x3]
    %v278 = vstv %s275
    %v279 = vmul.f32 %v278, %v276
    %v280 = vmul.f32 %v278, %v277
    %v281 = vadd.f32 %v273, %v279
    %v282 = vadd.f32 %v274, %v280
    %s283 = scalar_lea.vmem %s3, 5
    %284 = vst.msk [vmem:[%s283] ss:$8 sm:$0x3] %vm83, %v281
    %285 = vst.msk [vmem:[%s283] ss:$8 sm:$0x0] %vm83, %v281
    %s286 = scalar_lea.vmem %s3, 21
    %287 = vst.msk [vmem:[%s286] ss:$8 sm:$0x3] %vm83, %v282
    %288 = vst.msk [vmem:[%s286] ss:$8 sm:$0x0] %vm83, %v282
    %s289 = sld [smem:[#allocation2 + $0x300]]
    %v290 = vld [vmem:[%s0] ss:$4 sm:$0x3]
    %v291 = vld [vmem:[%s41] ss:$4 sm:$0x3]
    %v292 = vstv %s289
    %v293 = vmul.f32 %v292, %v290
    %v294 = vmul.f32 %v292, %v291
    %s295 = sld [smem:[#allocation4 + $0x6]]
    %v296 = vstv %s295
    %v297 = vadd.f32 %v293, %v296
    %v298 = vadd.f32 %v294, %v296
    %s299 = sld [smem:[#allocation2 + $0x301]]
    %v300 = vld [vmem:[%s51] ss:$4 sm:$0x3]
    %v301 = vld [vmem:[%s53] ss:$4 sm:$0x3]
    %v302 = vstv %s299
    %v303 = vmul.f32 %v302, %v300
    %v304 = vmul.f32 %v302, %v301
    %v305 = vadd.f32 %v297, %v303
    %v306 = vadd.f32 %v298, %v304
    %s307 = sld [smem:[#allocation2 + $0x302]]
    %v308 = vld [vmem:[%s61] ss:$4 sm:$0x3]
    %v309 = vld [vmem:[%s63] ss:$4 sm:$0x3]
    %v310 = vstv %s307
    %v311 = vmul.f32 %v310, %v308
    %v312 = vmul.f32 %v310, %v309
    %v313 = vadd.f32 %v305, %v311
    %v314 = vadd.f32 %v306, %v312
    %s315 = sld [smem:[#allocation2 + $0x303]]
    %v316 = vld [vmem:[%s71] ss:$4 sm:$0x3]
    %v317 = vld [vmem:[%s73] ss:$4 sm:$0x3]
    %v318 = vstv %s315
    %v319 = vmul.f32 %v318, %v316
    %v320 = vmul.f32 %v318, %v317
    %v321 = vadd.f32 %v313, %v319
    %v322 = vadd.f32 %v314, %v320
    %s323 = scalar_lea.vmem %s3, 6
    %324 = vst.msk [vmem:[%s323] ss:$8 sm:$0x3] %vm83, %v321
    %325 = vst.msk [vmem:[%s323] ss:$8 sm:$0x0] %vm83, %v321
    %s326 = scalar_lea.vmem %s3, 22
    %327 = vst.msk [vmem:[%s326] ss:$8 sm:$0x3] %vm83, %v322
    %328 = vst.msk [vmem:[%s326] ss:$8 sm:$0x0] %vm83, %v322
    %s329 = sld [smem:[#allocation2 + $0x380]]
    %v330 = vld [vmem:[%s0] ss:$4 sm:$0x3]
    %v331 = vld [vmem:[%s41] ss:$4 sm:$0x3]
    %v332 = vstv %s329
    %v333 = vmul.f32 %v332, %v330
    %v334 = vmul.f32 %v332, %v331
    %s335 = sld [smem:[#allocation4 + $0x7]]
    %v336 = vstv %s335
    %v337 = vadd.f32 %v333, %v336
    %v338 = vadd.f32 %v334, %v336
    %s339 = sld [smem:[#allocation2 + $0x381]]
    %v340 = vld [vmem:[%s51] ss:$4 sm:$0x3]
    %v341 = vld [vmem:[%s53] ss:$4 sm:$0x3]
    %v342 = vstv %s339
    %v343 = vmul.f32 %v342, %v340
    %v344 = vmul.f32 %v342, %v341
    %v345 = vadd.f32 %v337, %v343
    %v346 = vadd.f32 %v338, %v344
    %s347 = sld [smem:[#allocation2 + $0x382]]
    %v348 = vld [vmem:[%s61] ss:$4 sm:$0x3]
    %v349 = vld [vmem:[%s63] ss:$4 sm:$0x3]
    %v350 = vstv %s347
    %v351 = vmul.f32 %v350, %v348
    %v352 = vmul.f32 %v350, %v349
    %v353 = vadd.f32 %v345, %v351
    %v354 = vadd.f32 %v346, %v352
    %s355 = sld [smem:[#allocation2 + $0x383]]
    %v356 = vld [vmem:[%s71] ss:$4 sm:$0x3]
    %v357 = vld [vmem:[%s73] ss:$4 sm:$0x3]
    %v358 = vstv %s355
    %v359 = vmul.f32 %v358, %v356
    %v360 = vmul.f32 %v358, %v357
    %v361 = vadd.f32 %v353, %v359
    %v362 = vadd.f32 %v354, %v360
    %s363 = scalar_lea.vmem %s3, 7
    %364 = vst.msk [vmem:[%s363] ss:$8 sm:$0x3] %vm83, %v361
    %365 = vst.msk [vmem:[%s363] ss:$8 sm:$0x0] %vm83, %v361
    %s366 = scalar_lea.vmem %s3, 23
    %367 = vst.msk [vmem:[%s366] ss:$8 sm:$0x3] %vm83, %v362
    %368 = vst.msk [vmem:[%s366] ss:$8 sm:$0x0] %vm83, %v362
    // Predicated region
    $region22: #{feature_map_forward.1} parent=1 // pred_check
      _
    $region23: #{feature_map_forward.1} parent=1 // pred_check_branch
      %370 = sbr.rel (0) target = $region25
    $region24: #{feature_map_forward.1} parent=1 // pred_region
      _
    $region25: #{feature_map_forward.1} parent=1 // pred_fallthru
      _
    // Predicated region
    $region26: #{feature_map_forward.1} parent=1 // pred_check
      _
    $region27: #{feature_map_forward.1} parent=1 // pred_check_branch
      %372 = sbr.rel (0) target = $region29
    $region28: #{feature_map_forward.1} parent=1 // pred_region
      _
    $region29: #{feature_map_forward.1} parent=1 // pred_fallthru
      _
    %373 = vsyncpa [#allocation3], 1
    %374 = vsyncpa [#allocation5], 1

</llo_original>
